<compile_context>
chip_gen: v7x
topology: tpu7x:2x2x1
jax: 0.10.0
libtpu: 0.0.40
codegen_flags: <defaults>
</compile_context>

<pallas_src>
import functools

import jax
import jax.numpy as jnp
from jax import lax
from jax.experimental import pallas as pl
from jax.experimental.pallas import tpu as pltpu


_TILE_CAP = 16384                 # batch rows per grid step (multiple of 128)
_VMEM_LIMIT = 48 * 1024 * 1024    # > v5e 16 MiB default, < v7x 64 MiB physical


# ---------------------------------------------------------------------------
# Kernels
# ---------------------------------------------------------------------------
def _logits_t(x, w, b):
    """Transposed logits (O, TB): contract the feature dims of w:(O,F) and x:(TB,F).

    Keeps the batch dimension on the 128-lane axis (lane-dense vregs / stores).
    """
    acc = lax.dot_general(
        w, x, (((1,), (1,)), ((), ())), preferred_element_type=jnp.float32
    )
    return acc + b  # b:(O,1) broadcasts along lanes


def _linear_kernel(x_ref, w_ref, b_ref, o_ref):
    """y^T = W x^T + b for one batch tile.  x:(TB,F) w:(O,F) b:(O,1) o:(O,TB)."""
    o_ref[...] = _logits_t(x_ref[...], w_ref[...], b_ref[...]).astype(o_ref.dtype)


def _infer_kernel(x_ref, w_ref, b_ref, p_ref):
    """Fused linear + argmax + remap.  x:(TB,F) w:(3,F) b:(3,1) p:(TB,) int32."""
    lt = _logits_t(x_ref[...], w_ref[...], b_ref[...])  # (3, TB)
    l0 = lt[0, :]
    l1 = lt[1, :]
    l2 = lt[2, :]
    # argmax with first-max tie-break (matches jnp/torch argmax):
    is0 = (l0 >= l1) & (l0 >= l2)                # argmax == 0
    is1 = jnp.logical_not(is0) & (l1 >= l2)      # argmax == 1
    # remap: class 0 -> -1, class 1 -> 1, class 2 -> 0
    p_ref[...] = jnp.where(
        is0, jnp.int32(-1), jnp.where(is1, jnp.int32(1), jnp.int32(0))
    )


# ---------------------------------------------------------------------------
# Wrappers
# ---------------------------------------------------------------------------
def _round_up(n, m):
    return ((n + m - 1) // m) * m


def _choose_tile(batch):
    # Multiple of 128 keeps the 1-D int32 infer store and the (3, TILE_B) forward
    # store unmasked/lane-dense and satisfies the (8,128) block constraints.
    return min(_TILE_CAP, _round_up(batch, 128))


def _compiler_params():
    return pltpu.CompilerParams(
        dimension_semantics=("parallel",),
        vmem_limit_bytes=_VMEM_LIMIT,
    )


@functools.partial(jax.jit, static_argnames=("tile_b",))
def kp1_forward(x, weight, bias, *, tile_b=None):
    """KP1.forward: logits = x @ W^T + b.   x:(B,F)  weight:(O,F)  bias:(O,)."""
    b, f = x.shape
    out_f = weight.shape[0]
    if tile_b is None:
        tile_b = _choose_tile(b)

    out_t = pl.pallas_call(
        _linear_kernel,
        out_shape=jax.ShapeDtypeStruct((out_f, b), x.dtype),
        grid=(pl.cdiv(b, tile_b),),
        in_specs=[
            pl.BlockSpec((tile_b, f), lambda i: (i, 0)),
            pl.BlockSpec((out_f, f), lambda i: (0, 0)),
            pl.BlockSpec((out_f, 1), lambda i: (0, 0)),
        ],
        out_specs=pl.BlockSpec((out_f, tile_b), lambda i: (0, i)),
        compiler_params=_compiler_params(),
    )(x, weight, bias.reshape(out_f, 1))

    return out_t.T  # (B, O) — tiny transpose (B*3 f32) in the wrapper


@functools.partial(jax.jit, static_argnames=("tile_b",))
def kp1_infer(x, weight, bias, *, tile_b=None):
    """KP1.infer: argmax over the 3 classes, remapped {0->-1, 1->1, 2->0}."""
    b, f = x.shape
    out_f = weight.shape[0]
    assert out_f == 3, "KP1.infer remap assumes exactly 3 classes"
    if tile_b is None:
        tile_b = _choose_tile(b)

    preds = pl.pallas_call(
        _infer_kernel,
        out_shape=jax.ShapeDtypeStruct((b,), jnp.int32),
        grid=(pl.cdiv(b, tile_b),),
        in_specs=[
            pl.BlockSpec((tile_b, f), lambda i: (i, 0)),
            pl.BlockSpec((out_f, f), lambda i: (0, 0)),
            pl.BlockSpec((out_f, 1), lambda i: (0, 0)),
        ],
        out_specs=pl.BlockSpec((tile_b,), lambda i: (i,)),
        compiler_params=_compiler_params(),
    )(x, weight, bias.reshape(out_f, 1))

    return preds


# ---------------------------------------------------------------------------
# Self-test
# ---------------------------------------------------------------------------
def _ref_forward(x, weight, bias):
    return x @ weight.T + bias


def _ref_infer(x, weight, bias):
    out = _ref_forward(x, weight, bias)
    preds = jnp.argmax(out, axis=1).astype(jnp.int32)
    preds = jnp.where(preds == 0, -1, preds)
    preds = jnp.where(preds == 2, 0, preds)
    return preds


if __name__ == "__main__":
    key = jax.random.PRNGKey(0)
    kw, kb, kx1, kx2 = jax.random.split(key, 4)

    in_features, out_features = 32, 3
    bound = 1.0 / (in_features ** 0.5)
    weight = jax.random.uniform(
        kw, (out_features, in_features), minval=-bound, maxval=bound, dtype=jnp.float32
    )
    bias = jax.random.uniform(
        kb, (out_features,), minval=-bound, maxval=bound, dtype=jnp.float32
    )

    # Case 1: small batch (single masked edge block)
    x1 = jax.random.normal(kx1, (8, in_features), dtype=jnp.float32)
    out1 = jax.block_until_ready(kp1_forward(x1, weight, bias))
    preds1 = jax.block_until_ready(kp1_infer(x1, weight, bias))
    assert out1.shape == (8, out_features)
    assert jnp.allclose(out1, _ref_forward(x1, weight, bias), atol=1e-5)
    assert jnp.array_equal(preds1, _ref_infer(x1, weight, bias))

    # Case 2: batch not 128-aligned, default (single-step) tile
    x2 = jax.random.normal(kx2, (1111, in_features), dtype=jnp.float32)
    out2 = jax.block_until_ready(kp1_forward(x2, weight, bias))
    preds2 = jax.block_until_ready(kp1_infer(x2, weight, bias))
    assert jnp.allclose(out2, _ref_forward(x2, weight, bias), atol=1e-4)
    assert jnp.array_equal(preds2, _ref_infer(x2, weight, bias))

    # Case 3: force a multi-step grid with a partial last block (tile_b=256 -> 5 steps)
    out3 = jax.block_until_ready(kp1_forward(x2, weight, bias, tile_b=256))
    preds3 = jax.block_until_ready(kp1_infer(x2, weight, bias, tile_b=256))
    assert jnp.allclose(out3, _ref_forward(x2, weight, bias), atol=1e-4)
    assert jnp.array_equal(preds3, _ref_infer(x2, weight, bias))

    print("KERNEL_OK")
</pallas_src>

<mosaic_0001>
module attributes {stable_mosaic.version = 11 : i64} {
  func.func @_linear_kernel(%arg0: i32, %arg1: memref<128x32xf32, #tpu.memory_space<vmem>>, %arg2: memref<3x32xf32, #tpu.memory_space<vmem>>, %arg3: memref<3x1xf32, #tpu.memory_space<vmem>>, %arg4: memref<3x128xf32, #tpu.memory_space<vmem>>) attributes {dimension_semantics = [#tpu.dimension_semantics<parallel>], iteration_bounds = array<i64: 1>, scalar_prefetch = 0 : i64, scratch_operands = 0 : i64, tpu.core_type = #tpu.core_type<tc>, window_params = [{transform_indices = @transform_0, window_bounds = array<i64: 128, 32>}, {pipeline_mode = #tpu.pipeline_mode<synchronous>, transform_indices = @transform_1, window_bounds = array<i64: 3, 32>}, {pipeline_mode = #tpu.pipeline_mode<synchronous>, transform_indices = @transform_2, window_bounds = array<i64: 3, 1>}, {transform_indices = @transform_3, window_bounds = array<i64: 3, 128>}]} {
    %c0 = arith.constant 0 : index
    %c0_0 = arith.constant 0 : index
    %0 = vector.load %arg1[%c0, %c0_0] : memref<128x32xf32, #tpu.memory_space<vmem>>, vector<128x32xf32>
    %c0_1 = arith.constant 0 : index
    %c0_2 = arith.constant 0 : index
    %1 = vector.load %arg2[%c0_1, %c0_2] : memref<3x32xf32, #tpu.memory_space<vmem>>, vector<3x32xf32>
    %c0_3 = arith.constant 0 : index
    %c0_4 = arith.constant 0 : index
    %2 = vector.load %arg3[%c0_3, %c0_4] : memref<3x1xf32, #tpu.memory_space<vmem>>, vector<3x1xf32>
    %cst = arith.constant dense<0.000000e+00> : vector<3x128xf32>
    %3 = tpu.matmul %1, %0, %cst {dimension_numbers = #tpu.dot_dimension_numbers<[1], [1], [0], [0], [0, 0, 1, 0], [], []>} : vector<3x32xf32>, vector<128x32xf32>, vector<3x128xf32> -> vector<3x128xf32>
    %4 = vector.broadcast %2 : vector<3x1xf32> to vector<3x128xf32>
    %5 = arith.addf %3, %4 : vector<3x128xf32>
    %c0_5 = arith.constant 0 : index
    %c0_6 = arith.constant 0 : index
    %6 = vector.load %arg4[%c0_5, %c0_6] : memref<3x128xf32, #tpu.memory_space<vmem>>, vector<3x128xf32>
    tpu.vector_store %arg4[%c0_5, %c0_6], %5 {strides = array<i32>} : memref<3x128xf32, #tpu.memory_space<vmem>>, vector<3x128xf32>,
    return
  }
  func.func @transform_0(%arg0: i32) -> (i32, i32) {
    %c0_i32 = arith.constant 0 : i32
    %c0_i32_0 = arith.constant 0 : i32
    return %arg0, %c0_i32 : i32, i32
  }
  func.func @transform_1(%arg0: i32) -> (i32, i32) {
    %c0_i32 = arith.constant 0 : i32
    %c0_i32_0 = arith.constant 0 : i32
    %c0_i32_1 = arith.constant 0 : i32
    return %c0_i32, %c0_i32_0 : i32, i32
  }
  func.func @transform_2(%arg0: i32) -> (i32, i32) {
    %c0_i32 = arith.constant 0 : i32
    %c0_i32_0 = arith.constant 0 : i32
    %c0_i32_1 = arith.constant 0 : i32
    return %c0_i32, %c0_i32_0 : i32, i32
  }
  func.func @transform_3(%arg0: i32) -> (i32, i32) {
    %c0_i32 = arith.constant 0 : i32
    %c0_i32_0 = arith.constant 0 : i32
    return %c0_i32, %arg0 : i32, i32
  }
}

</mosaic_0001>

<llo_original>
// kernel: kp1_forward.1
$region0: #{kp1_forward.1}
  #allocation0 [shape = 'u32[]', space=smem, size = 0x4, offset = 0x4, fixed_abs, tag = 'smem constant byte address 0x4 - core index']
  #allocation1 [shape = 'u32[144,128]{1,0:T(1,128)}', space=vmem, size = 0x12000, scoped, tag = 'internal scratch']
  %s0 = inlined_call_operand.vmem [shape: f32[8,32], index: 0, kind: input, shape index: {}]
  %s1 = inlined_call_operand.vmem [shape: f32[3,32], index: 1, kind: input, shape index: {}]
  %s2 = inlined_call_operand.vmem [shape: f32[3,1], index: 2, kind: input, shape index: {}]
  %s3 = inlined_call_operand.hbm [shape: f32[3,8], index: 3, kind: output, shape index: {}]
  %s4 = sld [smem:[#allocation0]]
  $region22: #{kp1_forward.1} parent=0
    _
  %s6 = ssub.s32 1, %s4
  %s7 = scalar_select 0, %s6, %s4
  $region1: #{kp1_forward.1} parent=0
    #allocation2 [shape = 'u8[2048]{0}', space=vmem, size = 0x800, scoped, tag = 'output window, operand 0, single buffered']
    #allocation3 [shape = 's32[1]{0}', space=sflag, size = 0x4, scoped, tag = 'scoped memory for kp1_forward.1']
    %8 = vsyncpa [#allocation3], 0
    // Predicated region
    $region2: #{kp1_forward.1} parent=1 // pred_check
      _
    $region3: #{kp1_forward.1} parent=1 // pred_check_branch
      %10 = sbr.rel (0) target = $region5
    $region4: #{kp1_forward.1} parent=1 // pred_region
      _
    $region5: #{kp1_forward.1} parent=1 // pred_fallthru
      _
    // Predicated region
    $region6: #{kp1_forward.1} parent=1 // pred_check
      _
    $region7: #{kp1_forward.1} parent=1 // pred_check_branch
      %12 = sbr.rel (0) target = $region9
    $region8: #{kp1_forward.1} parent=1 // pred_region
      _
    $region9: #{kp1_forward.1} parent=1 // pred_fallthru
      _
    // Predicated region
    $region10: #{kp1_forward.1} parent=1 // pred_check
      _
    $region11: #{kp1_forward.1} parent=1 // pred_check_branch
      %14 = sbr.rel (0) target = $region13
    $region12: #{kp1_forward.1} parent=1 // pred_region
      _
    $region13: #{kp1_forward.1} parent=1 // pred_fallthru
      _
    %v15 = vld [vmem:[%s0] sm:$0xff]
    %v16 = vld [vmem:[%s0 + $0x8] sm:$0xff]
    %v17 = vld [vmem:[%s0 + $0x10] sm:$0xff]
    %v18 = vld [vmem:[%s0 + $0x18] sm:$0xff]
    %v19 = vld [vmem:[%s0 + $0x20] sm:$0xff]
    %v20 = vld [vmem:[%s0 + $0x28] sm:$0xff]
    %v21 = vld [vmem:[%s0 + $0x30] sm:$0xff]
    %v22 = vld [vmem:[%s0 + $0x38] sm:$0xff]
    %v23 = vld [vmem:[%s0 + $0x40] sm:$0xff]
    %v24 = vld [vmem:[%s0 + $0x48] sm:$0xff]
    %v25 = vld [vmem:[%s0 + $0x50] sm:$0xff]
    %v26 = vld [vmem:[%s0 + $0x58] sm:$0xff]
    %v27 = vld [vmem:[%s0 + $0x60] sm:$0xff]
    %v28 = vld [vmem:[%s0 + $0x68] sm:$0xff]
    %v29 = vld [vmem:[%s0 + $0x70] sm:$0xff]
    %v30 = vld [vmem:[%s0 + $0x78] sm:$0xff]
    %v31 = vld [vmem:[%s1] sm:$0x7]
    %v32 = vld [vmem:[%s2] sm:$0x7]
    %34 = vset.pattern.permute.xlu0 0
    %35 = vperm.xlu0 %34, %v32
    %v36 = vpop.permute.xlu0 %35
    %vm38 = vcmask 261120
    %v40 = vsel %vm38, %v31, 0
    %v43 = vsel %vm38, %v15, 0
    %v46 = vsel %vm38, %v16, 0
    %v49 = vsel %vm38, %v17, 0
    %v52 = vsel %vm38, %v18, 0
    %v55 = vsel %vm38, %v19, 0
    %v58 = vsel %vm38, %v20, 0
    %v61 = vsel %vm38, %v21, 0
    %v64 = vsel %vm38, %v22, 0
    %v67 = vsel %vm38, %v23, 0
    %v70 = vsel %vm38, %v24, 0
    %v73 = vsel %vm38, %v25, 0
    %v76 = vsel %vm38, %v26, 0
    %v79 = vsel %vm38, %v27, 0
    %v82 = vsel %vm38, %v28, 0
    %v85 = vsel %vm38, %v29, 0
    %v88 = vsel %vm38, %v30, 0
    %90 = vmatprep.subr.mxu0 0.0
    %91 = vmatpush1.xpose.msra.mxu0 %v43
    %92 = vmatprep.subr.mxu0 0.0
    %93 = vmatpush1.xpose.msra.mxu0 %v46
    %94 = vmatprep.subr.mxu0 0.0
    %95 = vmatpush1.xpose.msra.mxu0 %v49
    %96 = vmatprep.subr.mxu0 0.0
    %97 = vmatpush1.xpose.msra.mxu0 %v52
    %98 = vmatprep.subr.mxu0 0.0
    %99 = vmatpush1.xpose.msra.mxu0 %v55
    %100 = vmatprep.subr.mxu0 0.0
    %101 = vmatpush1.xpose.msra.mxu0 %v58
    %102 = vmatprep.subr.mxu0 0.0
    %103 = vmatpush1.xpose.msra.mxu0 %v61
    %104 = vmatprep.subr.mxu0 0.0
    %105 = vmatpush1.xpose.msra.mxu0 %v64
    %106 = vmatprep.subr.mxu0 0.0
    %107 = vmatpush1.xpose.msra.mxu0 %v67
    %108 = vmatprep.subr.mxu0 0.0
    %109 = vmatpush1.xpose.msra.mxu0 %v70
    %110 = vmatprep.subr.mxu0 0.0
    %111 = vmatpush1.xpose.msra.mxu0 %v73
    %112 = vmatprep.subr.mxu0 0.0
    %113 = vmatpush1.xpose.msra.mxu0 %v76
    %114 = vmatprep.subr.mxu0 0.0
    %115 = vmatpush1.xpose.msra.mxu0 %v79
    %116 = vmatprep.subr.mxu0 0.0
    %117 = vmatpush1.xpose.msra.mxu0 %v82
    %118 = vmatprep.subr.mxu0 0.0
    %119 = vmatpush1.xpose.msra.mxu0 %v85
    %120 = vmatprep.subr.mxu0 0.0
    %121 = vmatpush1.xpose.msra.mxu0 %v88
    %122 = vmatprep.subr.mxu0 0.0
    %123 = vmatpush1.xpose.msra.mxu0 0.0
    %124 = vmatprep.subr.mxu0 0.0
    %125 = vmatpush1.xpose.msra.mxu0 0.0
    %126 = vmatprep.subr.mxu0 0.0
    %127 = vmatpush1.xpose.msra.mxu0 0.0
    %128 = vmatprep.subr.mxu0 0.0
    %129 = vmatpush1.xpose.msra.mxu0 0.0
    %130 = vmatprep.subr.mxu0 0.0
    %131 = vmatpush1.xpose.msra.mxu0 0.0
    %132 = vmatprep.subr.mxu0 0.0
    %133 = vmatpush1.xpose.msra.mxu0 0.0
    %134 = vmatprep.subr.mxu0 0.0
    %135 = vmatpush1.xpose.msra.mxu0 0.0
    %136 = vmatprep.subr.mxu0 0.0
    %137 = vmatpush1.xpose.msra.mxu0 0.0
    %138 = vmatprep.subr.mxu0 0.0
    %139 = vmatpush1.xpose.msra.mxu0 0.0
    %140 = vmatprep.subr.mxu0 0.0
    %141 = vmatpush1.xpose.msra.mxu0 0.0
    %142 = vmatprep.subr.mxu0 0.0
    %143 = vmatpush1.xpose.msra.mxu0 0.0
    %144 = vmatprep.subr.mxu0 0.0
    %145 = vmatpush1.xpose.msra.mxu0 0.0
    %146 = vmatprep.subr.mxu0 0.0
    %147 = vmatpush1.xpose.msra.mxu0 0.0
    %148 = vmatprep.subr.mxu0 0.0
    %149 = vmatpush1.xpose.msra.mxu0 0.0
    %150 = vmatprep.subr.mxu0 0.0
    %151 = vmatpush1.xpose.msra.mxu0 0.0
    %152 = vmatprep.subr.mxu0 0.0
    %153 = vmatpush1.xpose.msra.mxu0 0.0
    %154 = vmatprep.mubr.f32.mxu0 0.0
    %155 = vmatmul.mubr.f32.gmra.mrb[0].mxu0 %v40
    %v156 = vpop.f32.mrb[0].mxu0
    %v157 = vadd.f32 %v36, %v156
    %v158 = vpop.f32.mrb[0].mxu0
    %159 = vdwg.mxu0
    %160 = vst [vmem:[#allocation2] sm:$0x7] %v157
    // Predicated region
    $region14: #{kp1_forward.1} parent=1 // pred_check
      _
    $region15: #{kp1_forward.1} parent=1 // pred_check_branch
      %162 = sbr.rel (0) target = $region17
    $region16: #{kp1_forward.1} parent=1 // pred_region
      %s164 = ssub.s32 64, 64
      %165 = vsyncadd [#allocation3], %s164
      %s167 = sshll.u32 [#allocation2], 4
      %s168 = int_to_ptr.vmem [resolvable:$true] %s167
      %170 = dma.vmem_to_hbm [thread:$0]  %s168, 64, %s3, [#allocation3]
    $region17: #{kp1_forward.1} parent=1 // pred_fallthru
      _
    // Predicated region
    $region18: #{kp1_forward.1} parent=1 // pred_check
      _
    $region19: #{kp1_forward.1} parent=1 // pred_check_branch
      %172 = sbr.rel (0) target = $region21
    $region20: #{kp1_forward.1} parent=1 // pred_region
      %173 = dma.done [#allocation3], 64
    $region21: #{kp1_forward.1} parent=1 // pred_fallthru
      _
    %174 = vsyncpa [#allocation3], 1

</llo_original>
